<compile_context>
chip_gen: v5e
topology: v5e:2x2
jax: 0.10.0
libtpu: 0.0.40
codegen_flags: <defaults>
</compile_context>

<pallas_src>
import jax
import jax.numpy as jnp
from jax import lax
from jax.experimental import pallas as pl
from jax.experimental.pallas import tpu as pltpu


def linear_bias_residual_kernel(x_ref, w_ref, b_ref, other_ref, o_ref):
    # out = x @ W_io + bias + other, all resident in VMEM.
    x = x_ref[...]        # (B, IN)
    w = w_ref[...]        # (IN, OUT) -- pre-relayouted once offline, no transpose HLO/XLU
    acc = lax.dot_general(
        x, w,
        dimension_numbers=(((1,), (0,)), ((), ())),  # contract x's IN with w's IN
        preferred_element_type=jnp.float32,
    )
    # bias + residual on the VPU: the VALU slot is idle in a kernel whose only
    # other work is one tiny matmul, so these adds are free in-kernel.
    o_ref[...] = (acc + b_ref[...] + other_ref[...]).astype(o_ref.dtype)


def prepare_params(weight, bias):
    """One-time, offline parameter re-layout (NOT per call).

    weight: (OUT, IN) native nn.Linear layout -> (IN, OUT) so the kernel's MXU
    contraction needs no transpose.  bias: (OUT,) -> (1, OUT) 2-D VMEM layout.
    """
    w_io = jnp.asarray(weight).T
    bias2d = jnp.asarray(bias).reshape(1, -1)
    return w_io, bias2d


def linear_add(x, w_io, bias2d, other):
    """Computes x @ W_io + bias + other  (PyTorch nn.Linear(16,16) + residual)."""
    B, IN = x.shape
    OUT = w_io.shape[1]

    # Advisory cost hint: tells XLA this custom call is tiny (~512 MACs, ~2 KB).
    cost = pl.CostEstimate(
        flops=2 * B * IN * OUT,
        transcendentals=0,
        bytes_accessed=(B * IN + IN * OUT + OUT + 2 * B * OUT) * 4,
    )

    # Alias the residual input with the output when shapes/dtypes match
    # (they do for this module: (1, OUT) f32) -- avoids a fresh HBM result buffer.
    alias = (
        {3: 0}
        if (other.shape == (B, OUT) and other.dtype == x.dtype)
        else {}
    )

    # No grid: the whole problem fits in VMEM; a 1-step grid would only add
    # pipeline prologue/epilogue + double-buffer setup overhead.
    return pl.pallas_call(
        linear_bias_residual_kernel,
        out_shape=jax.ShapeDtypeStruct((B, OUT), x.dtype),
        in_specs=[
            pl.BlockSpec(memory_space=pltpu.MemorySpace.VMEM),  # x
            pl.BlockSpec(memory_space=pltpu.MemorySpace.VMEM),  # weight (IN, OUT)
            pl.BlockSpec(memory_space=pltpu.MemorySpace.VMEM),  # bias (1, OUT)
            pl.BlockSpec(memory_space=pltpu.MemorySpace.VMEM),  # other (1, OUT)
        ],
        out_specs=pl.BlockSpec(memory_space=pltpu.MemorySpace.VMEM),
        input_output_aliases=alias,
        cost_estimate=cost,
    )(x, w_io, bias2d, other)


if __name__ == "__main__":
    key = jax.random.PRNGKey(0)
    k_x, k_other, k_w, k_b = jax.random.split(key, 4)

    B, IN, OUT = 1, 16, 16

    # Module inputs / buffers (deterministic stand-ins for torch.randn).
    x = jax.random.normal(k_x, (B, IN), dtype=jnp.float32)
    other = jax.random.normal(k_other, (1, OUT), dtype=jnp.float32)

    # nn.Linear(16, 16) parameters, initialized deterministically
    # (uniform in [-1/sqrt(16), 1/sqrt(16)] like PyTorch's default init).
    bound = 1.0 / jnp.sqrt(jnp.float32(IN))
    weight = jax.random.uniform(k_w, (OUT, IN), minval=-bound, maxval=bound, dtype=jnp.float32)
    bias = jax.random.uniform(k_b, (OUT,), minval=-bound, maxval=bound, dtype=jnp.float32)

    # One-time offline re-layout of the parameters (outside the per-call path).
    w_io, bias2d = prepare_params(weight, bias)

    # Reference computed BEFORE the kernel call (the residual input may be
    # aliased to the kernel's output buffer).
    ref = x @ weight.T + bias + other

    out = linear_add(x, w_io, bias2d, other)
    jax.block_until_ready(out)

    assert out.shape == (B, OUT)
    assert jnp.allclose(out, ref, atol=1e-5, rtol=1e-5), "mismatch vs reference"

    print("KERNEL_OK")
</pallas_src>

<mosaic_0001>
module attributes {stable_mosaic.version = 11 : i64} {
  func.func @linear_bias_residual_kernel(%arg0: memref<1x16xf32, #tpu.memory_space<vmem>>, %arg1: memref<16x16xf32, #tpu.memory_space<vmem>>, %arg2: memref<1x16xf32, #tpu.memory_space<vmem>>, %arg3: memref<1x16xf32, #tpu.memory_space<vmem>>, %arg4: memref<1x16xf32, #tpu.memory_space<vmem>>) attributes {dimension_semantics = [], scalar_prefetch = 0 : i64, scratch_operands = 0 : i64, tpu.core_type = #tpu.core_type<tc>} {
    %c0 = arith.constant 0 : index
    %c0_0 = arith.constant 0 : index
    %0 = vector.load %arg0[%c0, %c0_0] : memref<1x16xf32, #tpu.memory_space<vmem>>, vector<1x16xf32>
    %c0_1 = arith.constant 0 : index
    %c0_2 = arith.constant 0 : index
    %1 = vector.load %arg1[%c0_1, %c0_2] : memref<16x16xf32, #tpu.memory_space<vmem>>, vector<16x16xf32>
    %cst = arith.constant dense<0.000000e+00> : vector<1x16xf32>
    %2 = tpu.matmul %0, %1, %cst {dimension_numbers = #tpu.dot_dimension_numbers<[1], [0], [0], [1], [0, 0, 1, 1], [], []>} : vector<1x16xf32>, vector<16x16xf32>, vector<1x16xf32> -> vector<1x16xf32>
    %c0_3 = arith.constant 0 : index
    %c0_4 = arith.constant 0 : index
    %3 = vector.load %arg2[%c0_3, %c0_4] : memref<1x16xf32, #tpu.memory_space<vmem>>, vector<1x16xf32>
    %4 = arith.addf %2, %3 : vector<1x16xf32>
    %c0_5 = arith.constant 0 : index
    %c0_6 = arith.constant 0 : index
    %5 = vector.load %arg3[%c0_5, %c0_6] : memref<1x16xf32, #tpu.memory_space<vmem>>, vector<1x16xf32>
    %6 = arith.addf %4, %5 : vector<1x16xf32>
    %c0_7 = arith.constant 0 : index
    %c0_8 = arith.constant 0 : index
    %7 = vector.load %arg4[%c0_7, %c0_8] : memref<1x16xf32, #tpu.memory_space<vmem>>, vector<1x16xf32>
    tpu.vector_store %arg4[%c0_7, %c0_8], %6 {strides = array<i32>} : memref<1x16xf32, #tpu.memory_space<vmem>>, vector<1x16xf32>,
    return
  }
}

</mosaic_0001>

<llo_original>
// kernel: tpu_custom_call.1
$region0: #{tpu_custom_call.1}
  #allocation0 [shape = 'u32[]', space=smem, size = 0x4, offset = 0x4, fixed_abs, tag = 'smem constant byte address 0x4 - core index']
  #allocation1 [shape = 'u32[72,128]{1,0:T(1,128)}', space=vmem, size = 0x9000, scoped, tag = 'internal scratch']
  %s0 = inlined_call_operand.vmem [shape: f32[1,16], index: 0, kind: input, shape index: {}]
  %s1 = inlined_call_operand.hbm [shape: f32[16,16], index: 1, kind: input, shape index: {}]
  %s2 = inlined_call_operand.vmem [shape: f32[1,16], index: 2, kind: input, shape index: {}]
  %s3 = inlined_call_operand.hbm [shape: f32[1,16], index: 3, kind: input, shape index: {}, may-alias: {3,4}]
  %s4 = inlined_call_operand.hbm [shape: f32[1,16], index: 4, kind: output, shape index: {}, may-alias: {3,4}]
  %s5 = sld [smem:[#allocation0]]
  $region34: #{tpu_custom_call.1} parent=0
    _
  %s7 = ssub.s32 1, %s5
  %s8 = scalar_select 0, %s7, %s5
  $region1: #{tpu_custom_call.1} parent=0
    #allocation2 [shape = 'u8[8192]{0}', space=vmem, size = 0x2000, scoped, tag = 'input window, operand 1, single buffered']
    #allocation3 [shape = 's32[1]{0}', space=sflag, size = 0x4, scoped, tag = 'scoped memory for tpu_custom_call.1']
    #allocation4 [shape = 's32[1]{0}', space=sflag, size = 0x4, scoped, tag = 'scoped memory for tpu_custom_call.1']
    #allocation5 [shape = 'u8[512]{0}', space=vmem, size = 0x400, scoped, tag = 'input window, operand 3, single buffered']
    #allocation6 [shape = 's32[1]{0}', space=sflag, size = 0x4, scoped, tag = 'scoped memory for tpu_custom_call.1']
    #allocation7 [shape = 'u8[512]{0}', space=vmem, size = 0x400, scoped, tag = 'output window, operand 0, single buffered']
    %9 = vsyncpa [#allocation3], 0
    %10 = vsyncpa [#allocation6], 0
    %11 = vsyncpa [#allocation4], 0
    // Predicated region
    $region2: #{tpu_custom_call.1} parent=1 // pred_check
      _
    $region3: #{tpu_custom_call.1} parent=1 // pred_check_branch
      %13 = sbr.rel (0) target = $region5
    $region4: #{tpu_custom_call.1} parent=1 // pred_region
      _
    $region5: #{tpu_custom_call.1} parent=1 // pred_fallthru
      _
    // Predicated region
    $region6: #{tpu_custom_call.1} parent=1 // pred_check
      _
    $region7: #{tpu_custom_call.1} parent=1 // pred_check_branch
      %15 = sbr.rel (0) target = $region9
    $region8: #{tpu_custom_call.1} parent=1 // pred_region
      %17 = vsyncadd [#allocation3], 0
      %s18 = sshll.u32 %s1, 4
      %s19 = int_to_ptr.hbm [resolvable:$true] %s18
      %s20 = sshll.u32 [#allocation2], 4
      %s21 = int_to_ptr.vmem [resolvable:$true] %s20
      %26 = dma.hbm_to_vmem [thread:$0]  %s19, 256, %s21, [#allocation3], 128, 128, 8
    $region9: #{tpu_custom_call.1} parent=1 // pred_fallthru
      _
    // Predicated region
    $region10: #{tpu_custom_call.1} parent=1 // pred_check
      _
    $region11: #{tpu_custom_call.1} parent=1 // pred_check_branch
      %28 = sbr.rel (0) target = $region13
    $region12: #{tpu_custom_call.1} parent=1 // pred_region
      _
    $region13: #{tpu_custom_call.1} parent=1 // pred_fallthru
      _
    // Predicated region
    $region14: #{tpu_custom_call.1} parent=1 // pred_check
      _
    $region15: #{tpu_custom_call.1} parent=1 // pred_check_branch
      %30 = sbr.rel (0) target = $region17
    $region16: #{tpu_custom_call.1} parent=1 // pred_region
      %32 = vsyncadd [#allocation6], 0
      %s34 = sshll.u32 %s3, 4
      %s35 = int_to_ptr.hbm [resolvable:$true] %s34
      %s36 = sshll.u32 [#allocation5], 4
      %s37 = int_to_ptr.vmem [resolvable:$true] %s36
      %39 = dma.hbm_to_vmem [thread:$0]  %s35, 16, %s37, [#allocation6]
    $region17: #{tpu_custom_call.1} parent=1 // pred_fallthru
      _
    // Predicated region
    $region18: #{tpu_custom_call.1} parent=1 // pred_check
      _
    $region19: #{tpu_custom_call.1} parent=1 // pred_check_branch
      %41 = sbr.rel (0) target = $region21
    $region20: #{tpu_custom_call.1} parent=1 // pred_region
      %43 = dma.done [#allocation3], 256
    $region21: #{tpu_custom_call.1} parent=1 // pred_fallthru
      _
    // Predicated region
    $region22: #{tpu_custom_call.1} parent=1 // pred_check
      _
    $region23: #{tpu_custom_call.1} parent=1 // pred_check_branch
      %45 = sbr.rel (0) target = $region25
    $region24: #{tpu_custom_call.1} parent=1 // pred_region
      %47 = dma.done [#allocation6], 16
    $region25: #{tpu_custom_call.1} parent=1 // pred_fallthru
      _
    %v48 = vld [vmem:[%s0] sm:$0x1]
    %v49 = vld [vmem:[#allocation2] sm:$0xff]
    %v50 = vld [vmem:[#allocation2 + $0x8] sm:$0xff]
    %v51 = vld [vmem:[%s2] sm:$0x1]
    %vm52 = vcmask 130048
    %v54 = vsel %vm52, %v48, 0
    %56 = vmatpush.msra.mxu0 0.0
    %57 = vmatpush.msra.mxu0 0.0
    %58 = vmatpush.msra.mxu0 0.0
    %59 = vmatpush.msra.mxu0 0.0
    %60 = vmatpush.msra.mxu0 0.0
    %61 = vmatpush.msra.mxu0 0.0
    %62 = vmatpush.msra.mxu0 0.0
    %63 = vmatpush.msra.mxu0 0.0
    %64 = vmatpush.msra.mxu0 0.0
    %65 = vmatpush.msra.mxu0 0.0
    %66 = vmatpush.msra.mxu0 0.0
    %67 = vmatpush.msra.mxu0 0.0
    %68 = vmatpush.msra.mxu0 0.0
    %69 = vmatpush.msra.mxu0 0.0
    %70 = vmatpush.msra.mxu0 %v50
    %71 = vmatpush.msra.mxu0 %v49
    %72 = vmatmul.f32.gmra.mxu0 %v54
    %v73 = vpop.f32.mrf.mxu0
    %v74 = vadd.f32 %v51, %v73
    %75 = vdwg.mxu0
    %v76 = vld [vmem:[#allocation5] sm:$0x1]
    %v77 = vadd.f32 %v74, %v76
    %vm78 = vcmask 122880
    %79 = vst.msk [vmem:[#allocation7] sm:$0x1] %vm78, %v77
    // Predicated region
    $region26: #{tpu_custom_call.1} parent=1 // pred_check
      _
    $region27: #{tpu_custom_call.1} parent=1 // pred_check_branch
      %81 = sbr.rel (0) target = $region29
    $region28: #{tpu_custom_call.1} parent=1 // pred_region
      %83 = vsyncadd [#allocation4], 0
      %s85 = sshll.u32 [#allocation7], 4
      %s86 = int_to_ptr.vmem [resolvable:$true] %s85
      %s87 = sshll.u32 %s4, 4
      %s88 = int_to_ptr.hbm [resolvable:$true] %s87
      %90 = dma.vmem_to_hbm [thread:$0]  %s86, 16, %s88, [#allocation4]
    $region29: #{tpu_custom_call.1} parent=1 // pred_fallthru
      _
    // Predicated region
    $region30: #{tpu_custom_call.1} parent=1 // pred_check
      _
    $region31: #{tpu_custom_call.1} parent=1 // pred_check_branch
      %92 = sbr.rel (0) target = $region33
    $region32: #{tpu_custom_call.1} parent=1 // pred_region
      %94 = dma.done [#allocation4], 16
    $region33: #{tpu_custom_call.1} parent=1 // pred_fallthru
      _
    %95 = vsyncpa [#allocation3], 1
    %96 = vsyncpa [#allocation6], 1
    %97 = vsyncpa [#allocation4], 1

</llo_original>
